<compile_context>
chip_gen: v7x
topology: tpu7x:2x2x1
jax: 0.10.0
libtpu: 0.0.40
codegen_flags: <defaults>
</compile_context>

<pallas_src>
import functools

import jax
import jax.numpy as jnp
from jax.experimental import pallas as pl
from jax.experimental.pallas import tpu as pltpu

EMBEDDING_DIM = 32
BN_EPS = 1e-5
_LANES = 128
_TILE_ROWS = 512  # sublane rows per pipelined tile (512 x 128 f32 = 256 KiB)


def _round_up(x, m):
    return ((x + m - 1) // m) * m


def _add_bn_kernel(x1_ref, x2_ref, gamma_ref, beta_ref, fold_ref, o_ref,
                   s_ref, sq_ref, a_ref, b_ref, *, fold, total_rows):
    """Two-phase add + BatchNorm1d(train).

    grid = (2, num_tiles):
      phase 0: accumulate per-lane sum / sumsq over streamed (tile, lanes)
               blocks; on the last tile fold the `fold` interleaved feature
               replicas (masked matmul) and produce fused scale/shift (a, b).
      phase 1: re-stream the blocks, apply y = (x1+x2)*a + b, store.
    """
    phase = pl.program_id(0)
    t = pl.program_id(1)
    last_t = pl.num_programs(1) - 1

    @pl.when((phase == 0) & (t == 0))
    def _init():
        s_ref[...] = jnp.zeros_like(s_ref)
        sq_ref[...] = jnp.zeros_like(sq_ref)

    @pl.when(phase == 0)
    def _accumulate():
        x = x1_ref[...].astype(jnp.float32) + x2_ref[...].astype(jnp.float32)
        s_ref[...] += jnp.sum(x, axis=0, keepdims=True)
        sq_ref[...] += jnp.sum(x * x, axis=0, keepdims=True)

    @pl.when((phase == 0) & (t == last_t))
    def _finalize_stats():
        s = s_ref[...]
        sq = sq_ref[...]
        if fold > 1:
            # Fold the `fold` lane groups: fold_ref[i, j] = 1 iff
            # (i % emb) == (j % emb).  Result is the per-feature total,
            # already replicated across all lane groups (the exact broadcast
            # the normalize phase needs).  One tiny MXU matmul, done once.
            stats = jnp.concatenate([s, sq], axis=0)            # (2, lanes)
            folded = jnp.dot(stats, fold_ref[...],
                             preferred_element_type=jnp.float32)
            s = folded[0:1, :]
            sq = folded[1:2, :]
        inv_n = 1.0 / float(total_rows)  # true row count (zero padding is inert)
        mean = s * inv_n
        var = jnp.maximum(sq * inv_n - mean * mean, 0.0)  # clamp cancellation
        inv_std = jax.lax.rsqrt(var + BN_EPS)
        a = inv_std * gamma_ref[...].astype(jnp.float32)
        a_ref[...] = a
        b_ref[...] = beta_ref[...].astype(jnp.float32) - mean * a

    @pl.when(phase == 1)
    def _normalize():
        x = x1_ref[...].astype(jnp.float32) + x2_ref[...].astype(jnp.float32)
        o_ref[...] = (x * a_ref[...] + b_ref[...]).astype(o_ref.dtype)


def add_and_normalize(input1, input2, gamma, beta):
    """input1, input2: (B, P, E); gamma, beta: (E,). Returns (B, P, E)."""
    B, P, E = input1.shape
    assert input2.shape == (B, P, E)
    assert gamma.shape == (E,) and beta.shape == (E,)
    N = B * P

    x1 = input1.reshape(N, E)
    x2 = input2.reshape(N, E)

    fold = _LANES // E if (E <= _LANES and _LANES % E == 0) else 1

    if fold > 1:
        # Lane-dense packing: `fold` consecutive rows per sublane row.
        n_pack = _round_up(N, fold)
        if n_pack != N:
            pad = n_pack - N
            x1 = jnp.pad(x1, ((0, pad), (0, 0)))
            x2 = jnp.pad(x2, ((0, pad), (0, 0)))
        lanes = _LANES
        nr = n_pack // fold
        x1 = x1.reshape(nr, lanes)
        x2 = x2.reshape(nr, lanes)
        g = jnp.tile(gamma.reshape(1, E).astype(jnp.float32), (1, fold))
        bt = jnp.tile(beta.reshape(1, E).astype(jnp.float32), (1, fold))
        feat = jnp.arange(lanes, dtype=jnp.int32) % E
        fold_mat = (feat[:, None] == feat[None, :]).astype(jnp.float32)
    else:
        lanes = E
        nr = N
        g = gamma.reshape(1, E).astype(jnp.float32)
        bt = beta.reshape(1, E).astype(jnp.float32)
        fold_mat = jnp.zeros((1, 1), jnp.float32)  # unused dummy

    # Tile the sublane-row axis so the kernel is pipelined and never requires
    # more than a few tiles resident in VMEM (fits every generation's default
    # scoped VMEM; no vmem_limit override needed).
    if nr <= _TILE_ROWS:
        tile = nr
        nr_pad = nr
    else:
        tile = _TILE_ROWS
        nr_pad = _round_up(nr, tile)
        if nr_pad != nr:
            x1 = jnp.pad(x1, ((0, nr_pad - nr), (0, 0)))
            x2 = jnp.pad(x2, ((0, nr_pad - nr), (0, 0)))
    num_tiles = nr_pad // tile

    kern = functools.partial(_add_bn_kernel, fold=fold, total_rows=N)

    out = pl.pallas_call(
        kern,
        out_shape=jax.ShapeDtypeStruct((nr_pad, lanes), input1.dtype),
        grid=(2, num_tiles),
        in_specs=[
            pl.BlockSpec((tile, lanes), lambda p, t: (t, 0)),
            pl.BlockSpec((tile, lanes), lambda p, t: (t, 0)),
            pl.BlockSpec((1, lanes), lambda p, t: (0, 0)),
            pl.BlockSpec((1, lanes), lambda p, t: (0, 0)),
            pl.BlockSpec(fold_mat.shape, lambda p, t: (0, 0)),
        ],
        # Phase 0 never writes the output; keeping the block index pinned at 0
        # during phase 0 (p*t == 0) avoids flushing garbage tiles to HBM.
        out_specs=pl.BlockSpec((tile, lanes), lambda p, t: (p * t, 0)),
        scratch_shapes=[
            pltpu.VMEM((1, lanes), jnp.float32),  # sum
            pltpu.VMEM((1, lanes), jnp.float32),  # sum of squares
            pltpu.VMEM((1, lanes), jnp.float32),  # fused scale a
            pltpu.VMEM((1, lanes), jnp.float32),  # fused shift b
        ],
        compiler_params=pltpu.CompilerParams(
            dimension_semantics=("arbitrary", "arbitrary")),
    )(x1, x2, g, bt, fold_mat)

    out = out[:nr]
    if fold > 1:
        out = out.reshape(nr * fold, E)
    out = out[:N]
    return out.reshape(B, P, E)


def _reference(input1, input2, gamma, beta):
    x = (input1 + input2).astype(jnp.float32)
    B, P, E = x.shape
    xf = x.reshape(B * P, E)
    mean = jnp.mean(xf, axis=0, keepdims=True)
    var = jnp.mean((xf - mean) ** 2, axis=0, keepdims=True)
    y = (xf - mean) / jnp.sqrt(var + BN_EPS) * gamma[None, :] + beta[None, :]
    return y.reshape(B, P, E).astype(input1.dtype)


if __name__ == "__main__":
    key = jax.random.PRNGKey(0)
    k1, k2, k3, k4 = jax.random.split(key, 4)

    B, P, E = 2, 8, EMBEDDING_DIM  # batch, problem size, embedding dim

    input1 = jax.random.normal(k1, (B, P, E), dtype=jnp.float32)
    input2 = jax.random.normal(k2, (B, P, E), dtype=jnp.float32)

    # BatchNorm1d affine parameters (small random values to exercise affine).
    gamma = 1.0 + 0.1 * jax.random.normal(k3, (E,), dtype=jnp.float32)
    beta = 0.1 * jax.random.normal(k4, (E,), dtype=jnp.float32)

    out = add_and_normalize(input1, input2, gamma, beta)
    out = jax.block_until_ready(out)

    ref = _reference(input1, input2, gamma, beta)
    assert out.shape == (B, P, E)
    assert jnp.max(jnp.abs(out - ref)) < 1e-4

    print("KERNEL_OK")
</pallas_src>

<mosaic_0001>
module attributes {stable_mosaic.version = 11 : i64} {
  func.func @_add_bn_kernel(%arg0: i32, %arg1: i32, %arg2: memref<4x128xf32, #tpu.memory_space<vmem>>, %arg3: memref<4x128xf32, #tpu.memory_space<vmem>>, %arg4: memref<1x128xf32, #tpu.memory_space<vmem>>, %arg5: memref<1x128xf32, #tpu.memory_space<vmem>>, %arg6: memref<128x128xf32, #tpu.memory_space<vmem>>, %arg7: memref<4x128xf32, #tpu.memory_space<vmem>>, %arg8: memref<1x128xf32, #tpu.memory_space<vmem>>, %arg9: memref<1x128xf32, #tpu.memory_space<vmem>>, %arg10: memref<1x128xf32, #tpu.memory_space<vmem>>, %arg11: memref<1x128xf32, #tpu.memory_space<vmem>>) attributes {dimension_semantics = [#tpu.dimension_semantics<arbitrary>, #tpu.dimension_semantics<arbitrary>], iteration_bounds = array<i64: 2, 1>, scalar_prefetch = 0 : i64, scratch_operands = 4 : i64, tpu.core_type = #tpu.core_type<tc>, window_params = [{transform_indices = @transform_0, window_bounds = array<i64: 4, 128>}, {transform_indices = @transform_1, window_bounds = array<i64: 4, 128>}, {pipeline_mode = #tpu.pipeline_mode<synchronous>, transform_indices = @transform_2, window_bounds = array<i64: 1, 128>}, {pipeline_mode = #tpu.pipeline_mode<synchronous>, transform_indices = @transform_3, window_bounds = array<i64: 1, 128>}, {pipeline_mode = #tpu.pipeline_mode<synchronous>, transform_indices = @transform_4, window_bounds = array<i64: 128, 128>}, {transform_indices = @transform_5, window_bounds = array<i64: 4, 128>}]} {
    %c0_i32 = arith.constant 0 : i32
    %0 = arith.cmpi eq, %arg0, %c0_i32 : i32
    %c0_i32_0 = arith.constant 0 : i32
    %1 = arith.cmpi eq, %arg1, %c0_i32_0 : i32
    %2 = arith.andi %0, %1 : i1
    %3 = arith.extui %2 : i1 to i32
    %c0_i32_1 = arith.constant 0 : i32
    %4 = arith.cmpi ne, %3, %c0_i32_1 : i32
    scf.if %4 {
      %cst = arith.constant 0.000000e+00 : f32
      %16 = vector.broadcast %cst : f32 to vector<1x128xf32>
      %c0 = arith.constant 0 : index
      %c0_8 = arith.constant 0 : index
      %17 = vector.load %arg8[%c0, %c0_8] : memref<1x128xf32, #tpu.memory_space<vmem>>, vector<1x128xf32>
      tpu.vector_store %arg8[%c0, %c0_8], %16 {strides = array<i32>} : memref<1x128xf32, #tpu.memory_space<vmem>>, vector<1x128xf32>,
      %cst_9 = arith.constant 0.000000e+00 : f32
      %18 = vector.broadcast %cst_9 : f32 to vector<1x128xf32>
      %c0_10 = arith.constant 0 : index
      %c0_11 = arith.constant 0 : index
      %19 = vector.load %arg9[%c0_10, %c0_11] : memref<1x128xf32, #tpu.memory_space<vmem>>, vector<1x128xf32>
      tpu.vector_store %arg9[%c0_10, %c0_11], %18 {strides = array<i32>} : memref<1x128xf32, #tpu.memory_space<vmem>>, vector<1x128xf32>,
    } else {
    }
    %c0_i32_2 = arith.constant 0 : i32
    %5 = arith.cmpi eq, %arg0, %c0_i32_2 : i32
    %6 = arith.extui %5 : i1 to i32
    %c0_i32_3 = arith.constant 0 : i32
    %7 = arith.cmpi ne, %6, %c0_i32_3 : i32
    scf.if %7 {
      %c0 = arith.constant 0 : index
      %c0_8 = arith.constant 0 : index
      %16 = vector.load %arg2[%c0, %c0_8] : memref<4x128xf32, #tpu.memory_space<vmem>>, vector<4x128xf32>
      %c0_9 = arith.constant 0 : index
      %c0_10 = arith.constant 0 : index
      %17 = vector.load %arg3[%c0_9, %c0_10] : memref<4x128xf32, #tpu.memory_space<vmem>>, vector<4x128xf32>
      %18 = arith.addf %16, %17 : vector<4x128xf32>
      %c0_11 = arith.constant 0 : index
      %c0_12 = arith.constant 0 : index
      %19 = vector.load %arg8[%c0_11, %c0_12] : memref<1x128xf32, #tpu.memory_space<vmem>>, vector<1x128xf32>
      %cst = arith.constant dense<0.000000e+00> : vector<128xf32>
      %20 = vector.multi_reduction <add>, %18, %cst [0] : vector<4x128xf32> to vector<128xf32>
      %21 = vector.shape_cast %20 : vector<128xf32> to vector<1x128xf32>
      %22 = arith.addf %19, %21 : vector<1x128xf32>
      %c0_13 = arith.constant 0 : index
      %c0_14 = arith.constant 0 : index
      %23 = vector.load %arg8[%c0_13, %c0_14] : memref<1x128xf32, #tpu.memory_space<vmem>>, vector<1x128xf32>
      tpu.vector_store %arg8[%c0_13, %c0_14], %22 {strides = array<i32>} : memref<1x128xf32, #tpu.memory_space<vmem>>, vector<1x128xf32>,
      %c0_15 = arith.constant 0 : index
      %c0_16 = arith.constant 0 : index
      %24 = vector.load %arg9[%c0_15, %c0_16] : memref<1x128xf32, #tpu.memory_space<vmem>>, vector<1x128xf32>
      %25 = arith.mulf %18, %18 : vector<4x128xf32>
      %cst_17 = arith.constant dense<0.000000e+00> : vector<128xf32>
      %26 = vector.multi_reduction <add>, %25, %cst_17 [0] : vector<4x128xf32> to vector<128xf32>
      %27 = vector.shape_cast %26 : vector<128xf32> to vector<1x128xf32>
      %28 = arith.addf %24, %27 : vector<1x128xf32>
      %c0_18 = arith.constant 0 : index
      %c0_19 = arith.constant 0 : index
      %29 = vector.load %arg9[%c0_18, %c0_19] : memref<1x128xf32, #tpu.memory_space<vmem>>, vector<1x128xf32>
      tpu.vector_store %arg9[%c0_18, %c0_19], %28 {strides = array<i32>} : memref<1x128xf32, #tpu.memory_space<vmem>>, vector<1x128xf32>,
    } else {
    }
    %c0_i32_4 = arith.constant 0 : i32
    %8 = arith.cmpi eq, %arg0, %c0_i32_4 : i32
    %c0_i32_5 = arith.constant 0 : i32
    %9 = arith.cmpi eq, %arg1, %c0_i32_5 : i32
    %10 = arith.andi %8, %9 : i1
    %11 = arith.extui %10 : i1 to i32
    %c0_i32_6 = arith.constant 0 : i32
    %12 = arith.cmpi ne, %11, %c0_i32_6 : i32
    scf.if %12 {
      %c0 = arith.constant 0 : index
      %c0_8 = arith.constant 0 : index
      %16 = vector.load %arg8[%c0, %c0_8] : memref<1x128xf32, #tpu.memory_space<vmem>>, vector<1x128xf32>
      %c0_9 = arith.constant 0 : index
      %c0_10 = arith.constant 0 : index
      %17 = vector.load %arg9[%c0_9, %c0_10] : memref<1x128xf32, #tpu.memory_space<vmem>>, vector<1x128xf32>
      %18 = tpu.concatenate %16, %17 in 0 : vector<1x128xf32>, vector<1x128xf32> -> vector<2x128xf32>
      %c0_11 = arith.constant 0 : index
      %c0_12 = arith.constant 0 : index
      %19 = vector.load %arg6[%c0_11, %c0_12] : memref<128x128xf32, #tpu.memory_space<vmem>>, vector<128x128xf32>
      %cst = arith.constant dense<0.000000e+00> : vector<2x128xf32>
      %20 = tpu.matmul %18, %19, %cst {dimension_numbers = #tpu.dot_dimension_numbers<[1], [0], [0], [1], [0, 0, 1, 1], [], []>} : vector<2x128xf32>, vector<128x128xf32>, vector<2x128xf32> -> vector<2x128xf32>
      %21 = vector.extract_strided_slice %20 {offsets = [0, 0], sizes = [1, 128], strides = [1, 1]} : vector<2x128xf32> to vector<1x128xf32>
      %22 = vector.extract_strided_slice %20 {offsets = [1, 0], sizes = [1, 128], strides = [1, 1]} : vector<2x128xf32> to vector<1x128xf32>
      %cst_13 = arith.constant 6.250000e-02 : f32
      %23 = vector.broadcast %cst_13 : f32 to vector<1x128xf32>
      %24 = arith.mulf %21, %23 : vector<1x128xf32>
      %cst_14 = arith.constant 6.250000e-02 : f32
      %25 = vector.broadcast %cst_14 : f32 to vector<1x128xf32>
      %26 = arith.mulf %22, %25 : vector<1x128xf32>
      %27 = arith.mulf %24, %24 : vector<1x128xf32>
      %28 = arith.subf %26, %27 : vector<1x128xf32>
      %cst_15 = arith.constant 0.000000e+00 : f32
      %29 = vector.broadcast %cst_15 : f32 to vector<1x128xf32>
      %30 = arith.maximumf %28, %29 : vector<1x128xf32>
      %cst_16 = arith.constant 9.99999974E-6 : f32
      %31 = vector.broadcast %cst_16 : f32 to vector<1x128xf32>
      %32 = arith.addf %30, %31 : vector<1x128xf32>
      %33 = math.rsqrt %32 : vector<1x128xf32>
      %c0_17 = arith.constant 0 : index
      %c0_18 = arith.constant 0 : index
      %34 = vector.load %arg4[%c0_17, %c0_18] : memref<1x128xf32, #tpu.memory_space<vmem>>, vector<1x128xf32>
      %35 = arith.mulf %33, %34 : vector<1x128xf32>
      %c0_19 = arith.constant 0 : index
      %c0_20 = arith.constant 0 : index
      %36 = vector.load %arg10[%c0_19, %c0_20] : memref<1x128xf32, #tpu.memory_space<vmem>>, vector<1x128xf32>
      tpu.vector_store %arg10[%c0_19, %c0_20], %35 {strides = array<i32>} : memref<1x128xf32, #tpu.memory_space<vmem>>, vector<1x128xf32>,
      %c0_21 = arith.constant 0 : index
      %c0_22 = arith.constant 0 : index
      %37 = vector.load %arg5[%c0_21, %c0_22] : memref<1x128xf32, #tpu.memory_space<vmem>>, vector<1x128xf32>
      %38 = arith.mulf %24, %35 : vector<1x128xf32>
      %39 = arith.subf %37, %38 : vector<1x128xf32>
      %c0_23 = arith.constant 0 : index
      %c0_24 = arith.constant 0 : index
      %40 = vector.load %arg11[%c0_23, %c0_24] : memref<1x128xf32, #tpu.memory_space<vmem>>, vector<1x128xf32>
      tpu.vector_store %arg11[%c0_23, %c0_24], %39 {strides = array<i32>} : memref<1x128xf32, #tpu.memory_space<vmem>>, vector<1x128xf32>,
    } else {
    }
    %c1_i32 = arith.constant 1 : i32
    %13 = arith.cmpi eq, %arg0, %c1_i32 : i32
    %14 = arith.extui %13 : i1 to i32
    %c0_i32_7 = arith.constant 0 : i32
    %15 = arith.cmpi ne, %14, %c0_i32_7 : i32
    scf.if %15 {
      %c0 = arith.constant 0 : index
      %c0_8 = arith.constant 0 : index
      %16 = vector.load %arg2[%c0, %c0_8] : memref<4x128xf32, #tpu.memory_space<vmem>>, vector<4x128xf32>
      %c0_9 = arith.constant 0 : index
      %c0_10 = arith.constant 0 : index
      %17 = vector.load %arg3[%c0_9, %c0_10] : memref<4x128xf32, #tpu.memory_space<vmem>>, vector<4x128xf32>
      %18 = arith.addf %16, %17 : vector<4x128xf32>
      %c0_11 = arith.constant 0 : index
      %c0_12 = arith.constant 0 : index
      %19 = vector.load %arg10[%c0_11, %c0_12] : memref<1x128xf32, #tpu.memory_space<vmem>>, vector<1x128xf32>
      %20 = vector.broadcast %19 : vector<1x128xf32> to vector<4x128xf32>
      %21 = arith.mulf %18, %20 : vector<4x128xf32>
      %c0_13 = arith.constant 0 : index
      %c0_14 = arith.constant 0 : index
      %22 = vector.load %arg11[%c0_13, %c0_14] : memref<1x128xf32, #tpu.memory_space<vmem>>, vector<1x128xf32>
      %23 = vector.broadcast %22 : vector<1x128xf32> to vector<4x128xf32>
      %24 = arith.addf %21, %23 : vector<4x128xf32>
      %c0_15 = arith.constant 0 : index
      %c0_16 = arith.constant 0 : index
      %25 = vector.load %arg7[%c0_15, %c0_16] : memref<4x128xf32, #tpu.memory_space<vmem>>, vector<4x128xf32>
      tpu.vector_store %arg7[%c0_15, %c0_16], %24 {strides = array<i32>} : memref<4x128xf32, #tpu.memory_space<vmem>>, vector<4x128xf32>,
    } else {
    }
    return
  }
  func.func @transform_0(%arg0: i32, %arg1: i32) -> (i32, i32) {
    %c0_i32 = arith.constant 0 : i32
    %c0_i32_0 = arith.constant 0 : i32
    return %arg1, %c0_i32 : i32, i32
  }
  func.func @transform_1(%arg0: i32, %arg1: i32) -> (i32, i32) {
    %c0_i32 = arith.constant 0 : i32
    %c0_i32_0 = arith.constant 0 : i32
    return %arg1, %c0_i32 : i32, i32
  }
  func.func @transform_2(%arg0: i32, %arg1: i32) -> (i32, i32) {
    %c0_i32 = arith.constant 0 : i32
    %c0_i32_0 = arith.constant 0 : i32
    %c0_i32_1 = arith.constant 0 : i32
    return %c0_i32, %c0_i32_0 : i32, i32
  }
  func.func @transform_3(%arg0: i32, %arg1: i32) -> (i32, i32) {
    %c0_i32 = arith.constant 0 : i32
    %c0_i32_0 = arith.constant 0 : i32
    %c0_i32_1 = arith.constant 0 : i32
    return %c0_i32, %c0_i32_0 : i32, i32
  }
  func.func @transform_4(%arg0: i32, %arg1: i32) -> (i32, i32) {
    %c0_i32 = arith.constant 0 : i32
    %c0_i32_0 = arith.constant 0 : i32
    %c0_i32_1 = arith.constant 0 : i32
    return %c0_i32, %c0_i32_0 : i32, i32
  }
  func.func @transform_5(%arg0: i32, %arg1: i32) -> (i32, i32) {
    %0 = arith.muli %arg0, %arg1 : i32
    %c0_i32 = arith.constant 0 : i32
    %c0_i32_0 = arith.constant 0 : i32
    return %0, %c0_i32 : i32, i32
  }
}

</mosaic_0001>

<llo_original>
// kernel: tpu_custom_call.1
$region0: #{tpu_custom_call.1}
  #allocation0 [shape = 'u32[]', space=smem, size = 0x4, offset = 0x4, fixed_abs, tag = 'smem constant byte address 0x4 - core index']
  #allocation1 [shape = 'u32[144,128]{1,0:T(1,128)}', space=vmem, size = 0x12000, scoped, tag = 'internal scratch']
  #allocation2 [shape = 'f32[1,128]{1,0:T(1,128)}', space=vmem, size = 0x200, scoped, tag = 'scratch operand']
  #allocation3 [shape = 'f32[1,128]{1,0:T(1,128)}', space=vmem, size = 0x200, scoped, tag = 'scratch operand']
  #allocation4 [shape = 'f32[1,128]{1,0:T(1,128)}', space=vmem, size = 0x200, scoped, tag = 'scratch operand']
  #allocation5 [shape = 'f32[1,128]{1,0:T(1,128)}', space=vmem, size = 0x200, scoped, tag = 'scratch operand']
  %s0 = inlined_call_operand.hbm [shape: f32[4,128], index: 0, kind: input, shape index: {}]
  %s1 = inlined_call_operand.hbm [shape: f32[4,128], index: 1, kind: input, shape index: {}]
  %s2 = inlined_call_operand.vmem [shape: f32[1,128], index: 2, kind: input, shape index: {}]
  %s3 = inlined_call_operand.vmem [shape: f32[1,128], index: 3, kind: input, shape index: {}]
  %s4 = inlined_call_operand.hbm [shape: f32[128,128], index: 4, kind: input, shape index: {}]
  %s5 = inlined_call_operand.hbm [shape: f32[4,128], index: 5, kind: output, shape index: {}]
  %s6 = sld [smem:[#allocation0]]
  $region81: #{tpu_custom_call.1} parent=0
    _
  %s8 = ssub.s32 1, %s6
  %s9 = scalar_select 0, %s8, %s6
  $region1: #{tpu_custom_call.1} parent=0
    #allocation6 [shape = 'u8[2048]{0}', space=vmem, size = 0x800, scoped, tag = 'input window, operand 0, single buffered']
    #allocation7 [shape = 's32[2]{0}', space=sflag, size = 0x8, scoped, tag = 'scoped memory for tpu_custom_call.1']
    #allocation8 [shape = 's32[2]{0}', space=sflag, size = 0x8, scoped, tag = 'scoped memory for tpu_custom_call.1']
    #allocation9 [shape = 'u8[2048]{0}', space=vmem, size = 0x800, scoped, tag = 'input window, operand 1, single buffered']
    #allocation10 [shape = 's32[1]{0}', space=sflag, size = 0x4, scoped, tag = 'scoped memory for tpu_custom_call.1']
    #allocation11 [shape = 'u8[65536]{0}', space=vmem, size = 0x10000, scoped, tag = 'input window, operand 4, single buffered']
    #allocation12 [shape = 'u8[4096]{0}', space=vmem, size = 0x1000, scoped, tag = 'output window, operand 0']
    %10 = vsyncpa [#allocation7], 0
    %11 = vsyncpa [#allocation10], 0
    %12 = vsyncpa [#allocation8], 0
    %s13 = scalar_lea.sflag [#allocation8], 1
    %14 = vsyncpa %s13, 0
    loop: start=0, step=1, limit=4
    $region2: #{tpu_custom_call.1} parent=1 // loop_pre_header
      _
    $region3: #{tpu_custom_call.1} parent=1 // loop_header
      %s16 = sphi 0, %s20
      %p17 = scmp.ge.s32.totalorder %s16, 4
      %s23 = sphi 0, %s35
      %s24 = sphi 0, %s31
      %s25 = sphi 0, %s23
      %s26 = sphi 0, %s24
      %s27 = sphi 0, %s25
      %s28 = sphi 0, %s26
      %s38 = sphi 0, %s40
      %s41 = sphi 0, %s38
      %s42 = sphi 0, %s41
      %s58 = sphi 0, %s42
      %s64 = sphi 0, %s66
      %s67 = sphi 0, %s64
      %s68 = sphi 0, %s67
      %s84 = sphi 0, %s68
      %s88 = sphi 0, %s88
      %s90 = sphi 0, %s88
      %s91 = sphi 0, %s90
      %s105 = sphi 0, %s91
      %s109 = sphi 0, %s109
      %s111 = sphi 0, %s109
      %s112 = sphi 0, %s111
      %s126 = sphi 0, %s112
      %s130 = sphi 0, %s130
      %s132 = sphi 0, %s130
      %s133 = sphi 0, %s132
      %s147 = sphi 0, %s133
      %s155 = sphi 0, %s157
      %s158 = sphi 0, %s155
      %s159 = sphi 0, %s158
      %s175 = sphi 0, %s159
    $region4: #{tpu_custom_call.1} parent=1 // loop_header_branch
      %19 = sbr.rel (%p17) target = $region8
    $region5: #{tpu_custom_call.1} parent=1 // loop_body
      %s21 = ssub.s32 %s16, 1
      %s22 = ssub.s32 %s16, 2
      %s29 = sadd.s32 1, %s24
      %p30 = scmp.ge.s32.totalorder %s29, 1
      %s31 = scalar_select %p30, 0, %s29
      %s32 = sadd.s32 1, %s23
      %s33 = scalar_select %p30, %s32, %s23
      %p34 = scmp.ge.s32.totalorder %s33, 2
      %s35 = scalar_select %p34, 0, %s33
      %s36 = ssub.s32 %s24, %s31
      %p37 = scmp.eq.s32.totalorder %s36, 0
      %s39 = sadd.s32 %s38, 1
      %s40 = scalar_select %p37, %s38, %s39
      %p43 = pneg %p37
      %p44 = scmp.eq.s32.totalorder %s16, 1
      %p45 = por %p43, %p44
      %p46 = scmp.ne.s32.totalorder %s38, %s41
      %p47 = scmp.eq.s32.totalorder %s16, 0
      %p48 = por %p46, %p47
      %p49 = scmp.ne.s32.totalorder %s38, %s41
      %p50 = scmp.eq.s32.totalorder %s21, 1
      %p51 = por %p49, %p50
      %p52 = scmp.ne.s32.totalorder %s41, %s42
      %p53 = scmp.eq.s32.totalorder %s21, 0
      %p54 = por %p52, %p53
      %p55 = scmp.ne.s32.totalorder %s41, %s42
      %p56 = scmp.eq.s32.totalorder %s22, 1
      %p57 = por %p55, %p56
      %p59 = scmp.ne.s32.totalorder %s42, %s58
      %p60 = scmp.eq.s32.totalorder %s22, 0
      %p61 = por %p59, %p60
      %s62 = ssub.s32 %s24, %s31
      %p63 = scmp.eq.s32.totalorder %s62, 0
      %s65 = sadd.s32 %s64, 1
      %s66 = scalar_select %p63, %s64, %s65
      %p69 = pneg %p63
      %p70 = scmp.eq.s32.totalorder %s16, 1
      %p71 = por %p69, %p70
      %p72 = scmp.ne.s32.totalorder %s64, %s67
      %p73 = scmp.eq.s32.totalorder %s16, 0
      %p74 = por %p72, %p73
      %p75 = scmp.ne.s32.totalorder %s64, %s67
      %p76 = scmp.eq.s32.totalorder %s21, 1
      %p77 = por %p75, %p76
      %p78 = scmp.ne.s32.totalorder %s67, %s68
      %p79 = scmp.eq.s32.totalorder %s21, 0
      %p80 = por %p78, %p79
      %p81 = scmp.ne.s32.totalorder %s67, %s68
      %p82 = scmp.eq.s32.totalorder %s22, 1
      %p83 = por %p81, %p82
      %p85 = scmp.ne.s32.totalorder %s68, %s84
      %p86 = scmp.eq.s32.totalorder %s22, 0
      %p87 = por %p85, %p86
      %s89 = sadd.s32 %s88, 1
      %p92 = scmp.eq.s32.totalorder %s16, 1
      %p93 = scmp.ne.s32.totalorder %s88, %s90
      %p94 = scmp.eq.s32.totalorder %s16, 0
      %p95 = por %p93, %p94
      %p96 = scmp.ne.s32.totalorder %s88, %s90
      %p97 = scmp.eq.s32.totalorder %s21, 1
      %p98 = por %p96, %p97
      %p99 = scmp.ne.s32.totalorder %s90, %s91
      %p100 = scmp.eq.s32.totalorder %s21, 0
      %p101 = por %p99, %p100
      %p102 = scmp.ne.s32.totalorder %s90, %s91
      %p103 = scmp.eq.s32.totalorder %s22, 1
      %p104 = por %p102, %p103
      %p106 = scmp.ne.s32.totalorder %s91, %s105
      %p107 = scmp.eq.s32.totalorder %s22, 0
      %p108 = por %p106, %p107
      %s110 = sadd.s32 %s109, 1
      %p113 = scmp.eq.s32.totalorder %s16, 1
      %p114 = scmp.ne.s32.totalorder %s109, %s111
      %p115 = scmp.eq.s32.totalorder %s16, 0
      %p116 = por %p114, %p115
      %p117 = scmp.ne.s32.totalorder %s109, %s111
      %p118 = scmp.eq.s32.totalorder %s21, 1
      %p119 = por %p117, %p118
      %p120 = scmp.ne.s32.totalorder %s111, %s112
      %p121 = scmp.eq.s32.totalorder %s21, 0
      %p122 = por %p120, %p121
      %p123 = scmp.ne.s32.totalorder %s111, %s112
      %p124 = scmp.eq.s32.totalorder %s22, 1
      %p125 = por %p123, %p124
      %p127 = scmp.ne.s32.totalorder %s112, %s126
      %p128 = scmp.eq.s32.totalorder %s22, 0
      %p129 = por %p127, %p128
      %s131 = sadd.s32 %s130, 1
      %p134 = scmp.eq.s32.totalorder %s16, 1
      %p135 = scmp.ne.s32.totalorder %s130, %s132
      %p136 = scmp.eq.s32.totalorder %s16, 0
      %p137 = por %p135, %p136
      %p138 = scmp.ne.s32.totalorder %s130, %s132
      %p139 = scmp.eq.s32.totalorder %s21, 1
      %p140 = por %p138, %p139
      %p141 = scmp.ne.s32.totalorder %s132, %s133
      %p142 = scmp.eq.s32.totalorder %s21, 0
      %p143 = por %p141, %p142
      %p144 = scmp.ne.s32.totalorder %s132, %s133
      %p145 = scmp.eq.s32.totalorder %s22, 1
      %p146 = por %p144, %p145
      %p148 = scmp.ne.s32.totalorder %s133, %s147
      %p149 = scmp.eq.s32.totalorder %s22, 0
      %p150 = por %p148, %p149
      %s151 = smul.u32 %s23, %s24
      %s152 = smul.u32 %s35, %s31
      %s153 = ssub.s32 %s151, %s152
      %p154 = scmp.eq.s32.totalorder %s153, 0
      %s156 = sadd.s32 %s155, 1
      %s157 = scalar_select %p154, %s155, %s156
      %p160 = pneg %p154
      %p161 = scmp.eq.s32.totalorder %s16, 1
      %p162 = por %p160, %p161
      %p163 = scmp.ne.s32.totalorder %s155, %s158
      %p164 = scmp.eq.s32.totalorder %s16, 0
      %p165 = por %p163, %p164
      %p166 = scmp.ne.s32.totalorder %s155, %s158
      %p167 = scmp.eq.s32.totalorder %s21, 1
      %p168 = por %p166, %p167
      %p169 = scmp.ne.s32.totalorder %s158, %s159
      %p170 = scmp.eq.s32.totalorder %s21, 0
      %p171 = por %p169, %p170
      %p172 = scmp.ne.s32.totalorder %s158, %s159
      %p173 = scmp.eq.s32.totalorder %s22, 1
      %p174 = por %p172, %p173
      %p176 = scmp.ne.s32.totalorder %s159, %s175
      %p177 = scmp.eq.s32.totalorder %s22, 0
      %p178 = por %p176, %p177
      %p179 = scmp.le.s32.totalorder 1, %s16
      %p180 = scmp.lt.s32.totalorder %s16, 3
      %p181 = pnand %p179, %p180
      %p182 = pneg %p181
      // Predicated region
      $region9: #{tpu_custom_call.1} parent=5 // pred_check
        _
      $region10: #{tpu_custom_call.1} parent=5 // pred_check_branch
        %184 = sbr.rel (%p181) target = $region12
      $region11: #{tpu_custom_call.1} parent=5 // pred_region
        %s185 = ssub.s32 %s16, 1
        // Predicated region
        $region13: #{tpu_custom_call.1} parent=11 // pred_check
          %p186 = pneg %p54
        $region14: #{tpu_custom_call.1} parent=11 // pred_check_branch
          %188 = sbr.rel (%p186) target = $region16
        $region15: #{tpu_custom_call.1} parent=11 // pred_region
          %s190 = ssub.s32 64, 64
          %191 = vsyncadd [#allocation7], %s190
          %s192 = smul.addr %s26, 64
          %s193 = scalar_lea.hbm %s0, %s192
          %s195 = sshll.u32 [#allocation6], 4
          %s196 = int_to_ptr.vmem [resolvable:$true] %s195
          %198 = dma.hbm_to_vmem [thread:$0]  %s193, 64, %s196, [#allocation7]
        $region16: #{tpu_custom_call.1} parent=11 // pred_fallthru
          _
        // Predicated region
        $region17: #{tpu_custom_call.1} parent=11 // pred_check
          %p199 = pneg %p80
        $region18: #{tpu_custom_call.1} parent=11 // pred_check_branch
          %201 = sbr.rel (%p199) target = $region20
        $region19: #{tpu_custom_call.1} parent=11 // pred_region
          %s203 = ssub.s32 64, 64
          %204 = vsyncadd [#allocation10], %s203
          %s205 = smul.addr %s26, 64
          %s206 = scalar_lea.hbm %s1, %s205
          %s208 = sshll.u32 [#allocation9], 4
          %s209 = int_to_ptr.vmem [resolvable:$true] %s208
          %211 = dma.hbm_to_vmem [thread:$0]  %s206, 64, %s209, [#allocation10]
        $region20: #{tpu_custom_call.1} parent=11 // pred_fallthru
          _
        // Predicated region
        $region21: #{tpu_custom_call.1} parent=11 // pred_check
          %p212 = pneg %p101
        $region22: #{tpu_custom_call.1} parent=11 // pred_check_branch
          %214 = sbr.rel (%p212) target = $region24
        $region23: #{tpu_custom_call.1} parent=11 // pred_region
          _
        $region24: #{tpu_custom_call.1} parent=11 // pred_fallthru
          _
        // Predicated region
        $region25: #{tpu_custom_call.1} parent=11 // pred_check
          %p215 = pneg %p122
        $region26: #{tpu_custom_call.1} parent=11 // pred_check_branch
          %217 = sbr.rel (%p215) target = $region28
        $region27: #{tpu_custom_call.1} parent=11 // pred_region
          _
        $region28: #{tpu_custom_call.1} parent=11 // pred_fallthru
          _
        // Predicated region
        $region29: #{tpu_custom_call.1} parent=11 // pred_check
          %p218 = pneg %p143
        $region30: #{tpu_custom_call.1} parent=11 // pred_check_branch
          %220 = sbr.rel (%p218) target = $region32
        $region31: #{tpu_custom_call.1} parent=11 // pred_region
          %s222 = ssub.s32 2048, 2048
          %223 = vsyncadd [#allocation10], %s222
          %s224 = sshll.u32 [#allocation11], 4
          %s225 = int_to_ptr.vmem [resolvable:$true] %s224
          %230 = dma.hbm_to_vmem [thread:$0]  %s4, 2048, %s225, [#allocation10], 128, 128, 8
        $region32: #{tpu_custom_call.1} parent=11 // pred_fallthru
          _
      $region12: #{tpu_custom_call.1} parent=5 // pred_fallthru
        _
      %p231 = scmp.lt.s32.totalorder %s16, 2
      // Predicated region
      $region33: #{tpu_custom_call.1} parent=5 // pred_check
        %p232 = pneg %p231
      $region34: #{tpu_custom_call.1} parent=5 // pred_check_branch
        %234 = sbr.rel (%p232) target = $region36
      $region35: #{tpu_custom_call.1} parent=5 // pred_region
        _
      $region36: #{tpu_custom_call.1} parent=5 // pred_fallthru
        _
      %p235 = scmp.le.s32.totalorder 1, %s16
      %p236 = scmp.lt.s32.totalorder %s16, 3
      %p237 = pnand %p235, %p236
      %p238 = pneg %p237
      // Predicated region
      $region37: #{tpu_custom_call.1} parent=5 // pred_check
        _
      $region38: #{tpu_custom_call.1} parent=5 // pred_check_branch
        %240 = sbr.rel (%p237) target = $region40
      $region39: #{tpu_custom_call.1} parent=5 // pred_region
        %s241 = ssub.s32 %s16, 1
        // Predicated region
        $region41: #{tpu_custom_call.1} parent=39 // pred_check
          %p242 = pneg %p54
        $region42: #{tpu_custom_call.1} parent=39 // pred_check_branch
          %244 = sbr.rel (%p242) target = $region44
        $region43: #{tpu_custom_call.1} parent=39 // pred_region
          %245 = dma.done [#allocation7], 64
        $region44: #{tpu_custom_call.1} parent=39 // pred_fallthru
          _
        // Predicated region
        $region45: #{tpu_custom_call.1} parent=39 // pred_check
          %p246 = pneg %p80
        $region46: #{tpu_custom_call.1} parent=39 // pred_check_branch
          %248 = sbr.rel (%p246) target = $region48
        $region47: #{tpu_custom_call.1} parent=39 // pred_region
          %249 = dma.done [#allocation10], 64
        $region48: #{tpu_custom_call.1} parent=39 // pred_fallthru
          _
        // Predicated region
        $region49: #{tpu_custom_call.1} parent=39 // pred_check
          %p250 = pneg %p143
        $region50: #{tpu_custom_call.1} parent=39 // pred_check_branch
          %252 = sbr.rel (%p250) target = $region52
        $region51: #{tpu_custom_call.1} parent=39 // pred_region
          %253 = dma.done [#allocation10], 2048
        $region52: #{tpu_custom_call.1} parent=39 // pred_fallthru
          _
        %p254 = pneg %p54
        %p255 = pneg %p51
        %p256 = pneg %p80
        %p257 = pneg %p77
        %p258 = pneg %p101
        %p259 = pneg %p98
        %p260 = pneg %p122
        %p261 = pneg %p119
        %p262 = pneg %p143
        %p263 = pneg %p140
        %p264 = pneg %p171
        %p265 = pneg %p168
        %s266 = sand.u32 %s158, 1
        %s267 = scalar_lea.sflag [#allocation8], %s266
        %s268 = sand.u32 %s158, 1
        %s269 = smul.addr %s268, 4
        %s270 = scalar_lea.vmem [#allocation12], %s269
        %s271 = smul.u32 %s25, %s26
        %p272 = scmp.eq.s32.totalorder %s25, 0
        %p273 = scmp.eq.s32.totalorder %s26, 0
        %p274 = pnand %p272, %p273
        %p275 = pneg %p274
        // Predicated region
        $region53: #{tpu_custom_call.1} parent=39 // pred_check
          _
        $region54: #{tpu_custom_call.1} parent=39 // pred_check_branch
          %277 = sbr.rel (%p274) target = $region56
        $region55: #{tpu_custom_call.1} parent=39 // pred_region
          %278 = vst [vmem:[#allocation2] sm:$0x1] 0.0
          %279 = vst [vmem:[#allocation3] sm:$0x1] 0.0
        $region56: #{tpu_custom_call.1} parent=39 // pred_fallthru
          _
        // Predicated region
        $region57: #{tpu_custom_call.1} parent=39 // pred_check
          %p280 = pneg %p272
        $region58: #{tpu_custom_call.1} parent=39 // pred_check_branch
          %282 = sbr.rel (%p280) target = $region60
        $region59: #{tpu_custom_call.1} parent=39 // pred_region
          %v283 = vld [vmem:[#allocation6] sm:$0xf]
          %v284 = vld [vmem:[#allocation9] sm:$0xf]
          %v285 = vadd.f32 %v283, %v284
          %v286 = vld [vmem:[#allocation2] sm:$0x1]
          %vm287 = vcmask 1043456
          %v288 = vsel %vm287, %v285, 0.0
          %v289 = vrot.slane %v288, 4
          %v290 = vadd.f32 %v288, %v289
          %v291 = vrot.slane %v290, 2
          %v292 = vadd.f32 %v290, %v291
          %v293 = vrot.slane %v292, 1
          %v294 = vadd.f32 %v292, %v293
          %v295 = vadd.f32 %v286, %v294
          %296 = vst [vmem:[#allocation2] sm:$0x1] %v295
          %v297 = vld [vmem:[#allocation3] sm:$0x1]
          %v298 = vmul.f32 %v285, %v285
          %v299 = vsel %vm287, %v298, 0.0
          %v300 = vrot.slane %v299, 4
          %v301 = vadd.f32 %v299, %v300
          %v302 = vrot.slane %v301, 2
          %v303 = vadd.f32 %v301, %v302
          %v304 = vrot.slane %v303, 1
          %v305 = vadd.f32 %v303, %v304
          %v306 = vadd.f32 %v297, %v305
          %307 = vst [vmem:[#allocation3] sm:$0x1] %v306
        $region60: #{tpu_custom_call.1} parent=39 // pred_fallthru
          _
        // Predicated region
        $region61: #{tpu_custom_call.1} parent=39 // pred_check
          _
        $region62: #{tpu_custom_call.1} parent=39 // pred_check_branch
          %309 = sbr.rel (%p274) target = $region64
        $region63: #{tpu_custom_call.1} parent=39 // pred_region
          %v310 = vld [vmem:[#allocation2] sm:$0x1]
          %v311 = vld [vmem:[#allocation3] sm:$0x1]
          %v313 = vlaneseq
          %v314 = vshrl.u32 %v313, 7
          %v315 = vsub.s32 0, %v314
          %v316 = vrot.slane %v311, %v315
          %vm318 = vcmask 1040384
          %v319 = vsel %vm318, %v310, %v316
          %v320 = vld [vmem:[#allocation11] sm:$0xff]
          %v321 = vld [vmem:[#allocation11 + $0x8] sm:$0xff]
          %v322 = vld [vmem:[#allocation11 + $0x10] sm:$0xff]
          %v323 = vld [vmem:[#allocation11 + $0x18] sm:$0xff]
          %v324 = vld [vmem:[#allocation11 + $0x20] sm:$0xff]
          %v325 = vld [vmem:[#allocation11 + $0x28] sm:$0xff]
          %v326 = vld [vmem:[#allocation11 + $0x30] sm:$0xff]
          %v327 = vld [vmem:[#allocation11 + $0x38] sm:$0xff]
          %v328 = vld [vmem:[#allocation11 + $0x40] sm:$0xff]
          %v329 = vld [vmem:[#allocation11 + $0x48] sm:$0xff]
          %v330 = vld [vmem:[#allocation11 + $0x50] sm:$0xff]
          %v331 = vld [vmem:[#allocation11 + $0x58] sm:$0xff]
          %v332 = vld [vmem:[#allocation11 + $0x60] sm:$0xff]
          %v333 = vld [vmem:[#allocation11 + $0x68] sm:$0xff]
          %v334 = vld [vmem:[#allocation11 + $0x70] sm:$0xff]
          %v335 = vld [vmem:[#allocation11 + $0x78] sm:$0xff]
          %336 = vmatprep.subr.mxu0 0.0
          %337 = vmatpush1.msra.mxu0 %v320
          %338 = vmatprep.subr.mxu0 0.0
          %339 = vmatpush1.msra.mxu0 %v321
          %340 = vmatprep.subr.mxu0 0.0
          %341 = vmatpush1.msra.mxu0 %v322
          %342 = vmatprep.subr.mxu0 0.0
          %343 = vmatpush1.msra.mxu0 %v323
          %344 = vmatprep.subr.mxu0 0.0
          %345 = vmatpush1.msra.mxu0 %v324
          %346 = vmatprep.subr.mxu0 0.0
          %347 = vmatpush1.msra.mxu0 %v325
          %348 = vmatprep.subr.mxu0 0.0
          %349 = vmatpush1.msra.mxu0 %v326
          %350 = vmatprep.subr.mxu0 0.0
          %351 = vmatpush1.msra.mxu0 %v327
          %352 = vmatprep.subr.mxu0 0.0
          %353 = vmatpush1.msra.mxu0 %v328
          %354 = vmatprep.subr.mxu0 0.0
          %355 = vmatpush1.msra.mxu0 %v329
          %356 = vmatprep.subr.mxu0 0.0
          %357 = vmatpush1.msra.mxu0 %v330
          %358 = vmatprep.subr.mxu0 0.0
          %359 = vmatpush1.msra.mxu0 %v331
          %360 = vmatprep.subr.mxu0 0.0
          %361 = vmatpush1.msra.mxu0 %v332
          %362 = vmatprep.subr.mxu0 0.0
          %363 = vmatpush1.msra.mxu0 %v333
          %364 = vmatprep.subr.mxu0 0.0
          %365 = vmatpush1.msra.mxu0 %v334
          %366 = vmatprep.subr.mxu0 0.0
          %367 = vmatpush1.msra.mxu0 %v335
          %368 = vmatprep.subr.mxu0 0.0
          %369 = vmatpush1.msra.mxu0 0.0
          %370 = vmatprep.subr.mxu0 0.0
          %371 = vmatpush1.msra.mxu0 0.0
          %372 = vmatprep.subr.mxu0 0.0
          %373 = vmatpush1.msra.mxu0 0.0
          %374 = vmatprep.subr.mxu0 0.0
          %375 = vmatpush1.msra.mxu0 0.0
          %376 = vmatprep.subr.mxu0 0.0
          %377 = vmatpush1.msra.mxu0 0.0
          %378 = vmatprep.subr.mxu0 0.0
          %379 = vmatpush1.msra.mxu0 0.0
          %380 = vmatprep.subr.mxu0 0.0
          %381 = vmatpush1.msra.mxu0 0.0
          %382 = vmatprep.subr.mxu0 0.0
          %383 = vmatpush1.msra.mxu0 0.0
          %384 = vmatprep.subr.mxu0 0.0
          %385 = vmatpush1.msra.mxu0 0.0
          %386 = vmatprep.subr.mxu0 0.0
          %387 = vmatpush1.msra.mxu0 0.0
          %388 = vmatprep.subr.mxu0 0.0
          %389 = vmatpush1.msra.mxu0 0.0
          %390 = vmatprep.subr.mxu0 0.0
          %391 = vmatpush1.msra.mxu0 0.0
          %392 = vmatprep.subr.mxu0 0.0
          %393 = vmatpush1.msra.mxu0 0.0
          %394 = vmatprep.subr.mxu0 0.0
          %395 = vmatpush1.msra.mxu0 0.0
          %396 = vmatprep.subr.mxu0 0.0
          %397 = vmatpush1.msra.mxu0 0.0
          %398 = vmatprep.subr.mxu0 0.0
          %399 = vmatpush1.msra.mxu0 0.0
          %400 = vmatprep.mubr.f32.mxu0 0.0
          %401 = vmatmul.mubr.f32.gmra.mrb[0].mxu0 %v319
          %v402 = vpop.f32.mrb[0].mxu0
          %v403 = vadd.f32 0.0, %v402
          %v404 = vpop.f32.mrb[0].mxu0
          %405 = vdwg.mxu0
          %v406 = vmul.f32 %v403, 0.0625
          %v407 = vmul.f32 %v406, %v406
          %v409 = vrot.slane %v407, 7
          %v411 = vsub.f32 %v406, %v409
          %v412 = vmax.f32 %v411, 0.0
          %v413 = vadd.f32 %v412, 1e-05
          %v414 = vrsqrt.pop %v413
          %v415 = vld [vmem:[%s2] sm:$0x1]
          %v417 = vlaneseq
          %v418 = vshrl.u32 %v417, 7
          %v419 = vsub.s32 0, %v418
          %v420 = vrot.slane %v415, %v419
          %v422 = vmul.f32 %v414, %v420
          %423 = vst [vmem:[#allocation4 - $0x1] sm:$0x2] %v422
          %v424 = vld [vmem:[%s3] sm:$0x1]
          %v426 = vrot.slane %v422, 1
          %v428 = vmul.f32 %v406, %v426
          %v429 = vsub.f32 %v424, %v428
          %430 = vst [vmem:[#allocation5] sm:$0x1] %v429
        $region64: #{tpu_custom_call.1} parent=39 // pred_fallthru
          _
        %p431 = scmp.eq.s32.totalorder %s25, 1
        // Predicated region
        $region65: #{tpu_custom_call.1} parent=39 // pred_check
          %p432 = pneg %p431
        $region66: #{tpu_custom_call.1} parent=39 // pred_check_branch
          %434 = sbr.rel (%p432) target = $region68
        $region67: #{tpu_custom_call.1} parent=39 // pred_region
          %v435 = vld [vmem:[#allocation6] sm:$0xf]
          %v436 = vld [vmem:[#allocation9] sm:$0xf]
          %v437 = vadd.f32 %v435, %v436
          %v438 = vld [vmem:[#allocation4] sm:$0x1]
          %v440 = vlaneseq
          %v441 = vshrl.u32 %v440, 7
          %v442 = vsub.s32 0, %v441
          %v443 = vrot.slane %v438, %v442
          %v445 = vmul.f32 %v437, %v443
          %v446 = vld [vmem:[#allocation5] sm:$0x1]
          %v448 = vlaneseq
          %v449 = vshrl.u32 %v448, 7
          %v450 = vsub.s32 0, %v449
          %v451 = vrot.slane %v446, %v450
          %v453 = vadd.f32 %v445, %v451
          %454 = vst [vmem:[%s270] sm:$0xf] %v453
        $region68: #{tpu_custom_call.1} parent=39 // pred_fallthru
          _
        %s455 = sand.u32 %s158, 1
        %s456 = scalar_lea.sflag [#allocation8], %s455
        %s457 = sand.u32 %s158, 1
        %s458 = smul.addr %s457, 4
        %s459 = scalar_lea.vmem [#allocation12], %s458
        // Predicated region
        $region69: #{tpu_custom_call.1} parent=39 // pred_check
          %p460 = pneg %p168
        $region70: #{tpu_custom_call.1} parent=39 // pred_check_branch
          %462 = sbr.rel (%p460) target = $region72
        $region71: #{tpu_custom_call.1} parent=39 // pred_region
          %s463 = smul.u32 %s25, %s26
          %s465 = ssub.s32 64, 64
          %466 = vsyncadd %s456, %s465
          %s467 = smul.addr %s463, 64
          %s468 = scalar_lea.hbm %s5, %s467
          %s470 = sshll.u32 %s459, 4
          %s471 = int_to_ptr.vmem [resolvable:$true] %s470
          %473 = dma.vmem_to_hbm [thread:$0]  %s471, 64, %s468, %s456
        $region72: #{tpu_custom_call.1} parent=39 // pred_fallthru
          _
      $region40: #{tpu_custom_call.1} parent=5 // pred_fallthru
        _
      %p474 = scmp.le.s32.totalorder 2, %s16
      // Predicated region
      $region73: #{tpu_custom_call.1} parent=5 // pred_check
        %p475 = pneg %p474
      $region74: #{tpu_custom_call.1} parent=5 // pred_check_branch
        %477 = sbr.rel (%p475) target = $region76
      $region75: #{tpu_custom_call.1} parent=5 // pred_region
        %s478 = ssub.s32 %s16, 2
        // Predicated region
        $region77: #{tpu_custom_call.1} parent=75 // pred_check
          %p479 = pneg %p174
        $region78: #{tpu_custom_call.1} parent=75 // pred_check_branch
          %481 = sbr.rel (%p479) target = $region80
        $region79: #{tpu_custom_call.1} parent=75 // pred_region
          %s482 = sand.u32 %s159, 1
          %s483 = scalar_lea.sflag [#allocation8], %s482
          %s484 = sand.u32 %s159, 1
          %s485 = smul.addr %s484, 4
          %s486 = scalar_lea.vmem [#allocation12], %s485
          %487 = dma.done %s483, 64
        $region80: #{tpu_custom_call.1} parent=75 // pred_fallthru
          _
      $region76: #{tpu_custom_call.1} parent=5 // pred_fallthru
        _
    $region6: #{tpu_custom_call.1} parent=1 // loop_footer
      %s20 = sadd.s32 1, %s16
    $region7: #{tpu_custom_call.1} parent=1 // loop_footer_branch
      %15 = sbr.rel target = $region3
    $region8: #{tpu_custom_call.1} parent=1 // loop_exit
      _
    %488 = vsyncpa [#allocation7], 1
    %s489 = scalar_lea.sflag [#allocation7], 1
    %490 = vsyncpa %s489, 1
    %491 = vsyncpa [#allocation10], 1
    %492 = vsyncpa [#allocation8], 1
    %s493 = scalar_lea.sflag [#allocation8], 1
    %494 = vsyncpa %s493, 1

</llo_original>
